<compile_context>
chip_gen: v6e
topology: v6e:2x2x1
jax: 0.10.0
libtpu: 0.0.40
codegen_flags: <defaults>
</compile_context>

<pallas_src>
import functools

import jax
import jax.numpy as jnp
from jax.experimental import pallas as pl
from jax.experimental.pallas import tpu as pltpu

_MAX_BATCH_TILE = 2048    # upper bound on rows per grid step (sweepable)
_MIN_SPLIT_BATCH = 512    # below this, run a single grid step


def _round_up(x, m):
    return (x + m - 1) // m * m


def _forward_body(s, a, w1, b1, w2s, w2a, b2, w3, b3, o_ref, compute_dtype):
    """(state, action) rows -> Q.  Weights arrive pre-cast to compute_dtype
    (done once in the wrapper); activations are cast in-kernel; accumulation
    is always float32."""
    cd = compute_dtype
    f32 = jnp.float32
    # fc_first + ReLU
    xs = jnp.dot(s.astype(cd), w1, preferred_element_type=f32)
    xs = jnp.maximum(xs + b1, 0.0)
    # concat(xs, actions) @ W2 + b2 (exact split form), then ReLU.
    x = (jnp.dot(xs.astype(cd), w2s, preferred_element_type=f32)
         + jnp.dot(a.astype(cd), w2a, preferred_element_type=f32)
         + b2)
    x = jnp.maximum(x, 0.0)
    # fc_last (no activation).  Store the narrow (tb, 1) Q column directly:
    # 4 B/row of HBM writeback (same bytes as a lane-packed layout) and no
    # wrapper-side slab slice.
    o_ref[...] = jnp.dot(x.astype(cd), w3, preferred_element_type=f32) + b3


def _critic_kernel_fused_w2(s_ref, a_ref, w1_ref, b1_ref, w2_ref, b2_ref,
                            w3_ref, b3_ref, o_ref, *, h1, compute_dtype):
    # Static Ref slices (h1 is a multiple of 8 -> sublane aligned, zero cost).
    _forward_body(s_ref[...], a_ref[...], w1_ref[...], b1_ref[...],
                  w2_ref[:h1, :], w2_ref[h1:, :], b2_ref[...],
                  w3_ref[...], b3_ref[...], o_ref, compute_dtype)


def _critic_kernel_split_w2(s_ref, a_ref, w1_ref, b1_ref, w2s_ref, w2a_ref,
                            b2_ref, w3_ref, b3_ref, o_ref, *, compute_dtype):
    _forward_body(s_ref[...], a_ref[...], w1_ref[...], b1_ref[...],
                  w2s_ref[...], w2a_ref[...], b2_ref[...],
                  w3_ref[...], b3_ref[...], o_ref, compute_dtype)


def _vmem_limit_bytes(tb, s, a, h1, h2):
    """Right-sized scoped-VMEM request (bytes), lane-padding aware, 2x headroom,
    capped at 32 MiB (well under even v7x's 64 MiB physical VMEM)."""
    f32 = 4
    lane = 128
    padl = lambda n: _round_up(n, lane)
    weights = (s * h1 + (h1 + a) * h2 + padl(h1) + padl(h2) + lane) * f32
    # Inputs and output are double-buffered; narrow lane dims pad to 128 lanes.
    io_tiles = 2 * tb * (padl(s) + padl(a) + padl(1)) * f32
    acts = tb * (h1 + h2 + lane) * f32
    need = 2 * (weights + io_tiles + acts)
    return int(min(max(need, 4 << 20), 32 << 20))


@functools.partial(jax.jit, static_argnames=("compute_dtype",))
def critic_forward(states, actions, params, compute_dtype=jnp.float32):
    """Pallas-backed Critic.forward(states, actions) -> (B, 1) Q-values."""
    B, S = states.shape
    A = actions.shape[1]
    h1, h2 = params["w1"].shape[1], params["w2"].shape[1]

    # Weights pre-cast ONCE here (no-op for float32) so resident weight refs
    # are not re-cast on the VPU every grid step in the bf16 path.
    w1 = params["w1"].astype(compute_dtype)
    w2 = params["w2"].astype(compute_dtype)
    w3 = params["w3"].astype(compute_dtype)
    b1_2d = params["b1"].reshape(1, h1).astype(jnp.float32)
    b2_2d = params["b2"].reshape(1, h2).astype(jnp.float32)
    b3_2d = params["b3"].reshape(1, 1).astype(jnp.float32)

    # Batch tiling: single step for small B; otherwise tiles of up to
    # _MAX_BATCH_TILE rows while keeping >= 2 grid steps so v7x can shard the
    # "parallel" axis across its 2 TensorCores (v5e/v6e: 1 TC, no downside).
    if B <= _MIN_SPLIT_BATCH:
        tb = B
    else:
        tb = min(_MAX_BATCH_TILE,
                 max(_MIN_SPLIT_BATCH, _round_up(pl.cdiv(B, 2), 8)))
    grid = (pl.cdiv(B, tb),)

    # NOTE(correctness): when B % tb != 0 the padded rows of the last block
    # hold unspecified data.  Every op here is row-independent and the
    # out-of-range rows are dropped by the masked output store, so this is
    # safe -- do not add cross-row reductions without masking those rows.

    if h1 % 8 == 0:
        # Default path: pass full W2, split with static Ref slices in-kernel.
        kernel = functools.partial(_critic_kernel_fused_w2, h1=h1,
                                   compute_dtype=compute_dtype)
        args = (states, actions, w1, b1_2d, w2, b2_2d, w3, b3_2d)
    else:
        # Sublane-unaligned h1: split once in the wrapper (always safe).
        kernel = functools.partial(_critic_kernel_split_w2,
                                   compute_dtype=compute_dtype)
        args = (states, actions, w1, b1_2d, w2[:h1, :], w2[h1:, :], b2_2d,
                w3, b3_2d)

    row_spec = lambda feat: pl.BlockSpec((tb, feat), lambda i: (i, 0))
    resident = lambda x: pl.BlockSpec(x.shape, lambda i: (0, 0))
    in_specs = [row_spec(S), row_spec(A)] + [resident(x) for x in args[2:]]

    return pl.pallas_call(
        kernel,
        out_shape=jax.ShapeDtypeStruct((B, 1), jnp.float32),
        grid=grid,
        in_specs=in_specs,
        out_specs=pl.BlockSpec((tb, 1), lambda i: (i, 0)),
        compiler_params=pltpu.CompilerParams(
            dimension_semantics=("parallel",),
            vmem_limit_bytes=_vmem_limit_bytes(tb, S, A, h1, h2)),
    )(*args)


def init_critic_params(key, state_size, action_size, hidden_sizes=(256, 128)):
    """Deterministic init mirroring Critic.reset_parameters (shapes are what matter)."""
    h1, h2 = hidden_sizes[0], hidden_sizes[-1]
    k1, k2, k3, kb1, kb2, kb3 = jax.random.split(key, 6)

    # Note: the reference hidden_init uses weight.size()[0] == out_features.
    lim1 = 1.0 / jnp.sqrt(jnp.float32(h1))
    lim2 = 1.0 / jnp.sqrt(jnp.float32(h2))
    lim3 = 0.003

    return {
        # stored as (in_features, out_features) so the kernel computes x @ W
        "w1": jax.random.uniform(k1, (state_size, h1), jnp.float32, -lim1, lim1),
        "b1": jax.random.uniform(kb1, (h1,), jnp.float32, -lim1, lim1),
        "w2": jax.random.uniform(k2, (h1 + action_size, h2), jnp.float32, -lim2, lim2),
        "b2": jax.random.uniform(kb2, (h2,), jnp.float32, -lim2, lim2),
        "w3": jax.random.uniform(k3, (h2, 1), jnp.float32, -lim3, lim3),
        "b3": jax.random.uniform(kb3, (1,), jnp.float32, -lim3, lim3),
    }


def critic_reference(states, actions, params):
    """Pure-JAX reference for correctness checking."""
    xs = jax.nn.relu(states @ params["w1"] + params["b1"])
    x = jnp.concatenate([xs, actions], axis=1)
    x = jax.nn.relu(x @ params["w2"] + params["b2"])
    return x @ params["w3"] + params["b3"]


if __name__ == "__main__":
    key = jax.random.PRNGKey(0)
    k_s, k_a, k_p, k_s2, k_a2 = jax.random.split(key, 5)

    B = 8
    state_size = 16
    action_size = 4
    hidden_sizes = (256, 128)   # default from the PyTorch module

    states = jax.random.normal(k_s, (B, state_size), dtype=jnp.float32)
    actions = jax.random.normal(k_a, (B, action_size), dtype=jnp.float32)
    params = init_critic_params(k_p, state_size, action_size, hidden_sizes)

    q = critic_forward(states, actions, params)
    jax.block_until_ready(q)
    q_ref = critic_reference(states, actions, params)
    assert q.shape == (B, 1)
    assert jnp.allclose(q, q_ref, atol=1e-5, rtol=1e-5)

    # Multi-step grid with a padded last tile (B=1000 -> 2 steps of 512 rows;
    # also exercises v7x 2-TC sharding of the "parallel" grid axis).
    B2 = 1000
    states2 = jax.random.normal(k_s2, (B2, state_size), dtype=jnp.float32)
    actions2 = jax.random.normal(k_a2, (B2, action_size), dtype=jnp.float32)
    q2 = critic_forward(states2, actions2, params)
    jax.block_until_ready(q2)
    q2_ref = critic_reference(states2, actions2, params)
    assert q2.shape == (B2, 1)
    assert jnp.allclose(q2, q2_ref, atol=1e-4, rtol=1e-4)

    # bf16-compute path (weights pre-cast once in the wrapper, f32 accumulate).
    # bf16 changes numerics vs the f32 reference, so use a loose tolerance.
    q2_bf16 = critic_forward(states2, actions2, params,
                             compute_dtype=jnp.bfloat16)
    jax.block_until_ready(q2_bf16)
    assert q2_bf16.shape == (B2, 1)
    assert float(jnp.max(jnp.abs(q2_bf16 - q2_ref))) < 5e-2

    print("KERNEL_OK")
</pallas_src>

<mosaic_0001>
module attributes {stable_mosaic.version = 11 : i64} {
  func.func @_critic_kernel_fused_w2(%arg0: i32, %arg1: memref<8x16xf32, #tpu.memory_space<vmem>>, %arg2: memref<8x4xf32, #tpu.memory_space<vmem>>, %arg3: memref<16x256xf32, #tpu.memory_space<vmem>>, %arg4: memref<1x256xf32, #tpu.memory_space<vmem>>, %arg5: memref<260x128xf32, #tpu.memory_space<vmem>>, %arg6: memref<1x128xf32, #tpu.memory_space<vmem>>, %arg7: memref<128x1xf32, #tpu.memory_space<vmem>>, %arg8: memref<1x1xf32, #tpu.memory_space<vmem>>, %arg9: memref<8x1xf32, #tpu.memory_space<vmem>>) attributes {dimension_semantics = [#tpu.dimension_semantics<parallel>], iteration_bounds = array<i64: 1>, scalar_prefetch = 0 : i64, scratch_operands = 0 : i64, tpu.core_type = #tpu.core_type<tc>, window_params = [{transform_indices = @transform_0, window_bounds = array<i64: 8, 16>}, {transform_indices = @transform_1, window_bounds = array<i64: 8, 4>}, {pipeline_mode = #tpu.pipeline_mode<synchronous>, transform_indices = @transform_2, window_bounds = array<i64: 16, 256>}, {pipeline_mode = #tpu.pipeline_mode<synchronous>, transform_indices = @transform_3, window_bounds = array<i64: 1, 256>}, {pipeline_mode = #tpu.pipeline_mode<synchronous>, transform_indices = @transform_4, window_bounds = array<i64: 260, 128>}, {pipeline_mode = #tpu.pipeline_mode<synchronous>, transform_indices = @transform_5, window_bounds = array<i64: 1, 128>}, {pipeline_mode = #tpu.pipeline_mode<synchronous>, transform_indices = @transform_6, window_bounds = array<i64: 128, 1>}, {pipeline_mode = #tpu.pipeline_mode<synchronous>, transform_indices = @transform_7, window_bounds = array<i64: 1, 1>}, {transform_indices = @transform_8, window_bounds = array<i64: 8, 1>}]} {
    %c0 = arith.constant 0 : index
    %c0_0 = arith.constant 0 : index
    %0 = vector.load %arg1[%c0, %c0_0] : memref<8x16xf32, #tpu.memory_space<vmem>>, vector<8x16xf32>
    %c0_1 = arith.constant 0 : index
    %c0_2 = arith.constant 0 : index
    %1 = vector.load %arg2[%c0_1, %c0_2] : memref<8x4xf32, #tpu.memory_space<vmem>>, vector<8x4xf32>
    %c0_3 = arith.constant 0 : index
    %c0_4 = arith.constant 0 : index
    %2 = vector.load %arg3[%c0_3, %c0_4] : memref<16x256xf32, #tpu.memory_space<vmem>>, vector<16x256xf32>
    %c0_5 = arith.constant 0 : index
    %c0_6 = arith.constant 0 : index
    %3 = vector.load %arg4[%c0_5, %c0_6] : memref<1x256xf32, #tpu.memory_space<vmem>>, vector<1x256xf32>
    %c0_7 = arith.constant 0 : index
    %c0_8 = arith.constant 0 : index
    %4 = vector.load %arg5[%c0_7, %c0_8] : memref<260x128xf32, #tpu.memory_space<vmem>>, vector<256x128xf32>
    %c256 = arith.constant 256 : index
    %c0_9 = arith.constant 0 : index
    %5 = vector.load %arg5[%c256, %c0_9] : memref<260x128xf32, #tpu.memory_space<vmem>>, vector<4x128xf32>
    %c0_10 = arith.constant 0 : index
    %c0_11 = arith.constant 0 : index
    %6 = vector.load %arg6[%c0_10, %c0_11] : memref<1x128xf32, #tpu.memory_space<vmem>>, vector<1x128xf32>
    %c0_12 = arith.constant 0 : index
    %c0_13 = arith.constant 0 : index
    %7 = vector.load %arg7[%c0_12, %c0_13] : memref<128x1xf32, #tpu.memory_space<vmem>>, vector<128x1xf32>
    %c0_14 = arith.constant 0 : index
    %c0_15 = arith.constant 0 : index
    %8 = vector.load %arg8[%c0_14, %c0_15] : memref<1x1xf32, #tpu.memory_space<vmem>>, vector<1x1xf32>
    %cst = arith.constant dense<0.000000e+00> : vector<8x256xf32>
    %9 = tpu.matmul %0, %2, %cst {dimension_numbers = #tpu.dot_dimension_numbers<[1], [0], [0], [1], [0, 0, 1, 1], [], []>} : vector<8x16xf32>, vector<16x256xf32>, vector<8x256xf32> -> vector<8x256xf32>
    %10 = vector.broadcast %3 : vector<1x256xf32> to vector<8x256xf32>
    %11 = arith.addf %9, %10 : vector<8x256xf32>
    %cst_16 = arith.constant 0.000000e+00 : f32
    %12 = vector.broadcast %cst_16 : f32 to vector<8x256xf32>
    %13 = arith.maximumf %11, %12 : vector<8x256xf32>
    %cst_17 = arith.constant dense<0.000000e+00> : vector<8x128xf32>
    %14 = tpu.matmul %13, %4, %cst_17 {dimension_numbers = #tpu.dot_dimension_numbers<[1], [0], [0], [1], [0, 0, 1, 1], [], []>} : vector<8x256xf32>, vector<256x128xf32>, vector<8x128xf32> -> vector<8x128xf32>
    %cst_18 = arith.constant dense<0.000000e+00> : vector<8x128xf32>
    %15 = tpu.matmul %1, %5, %cst_18 {dimension_numbers = #tpu.dot_dimension_numbers<[1], [0], [0], [1], [0, 0, 1, 1], [], []>} : vector<8x4xf32>, vector<4x128xf32>, vector<8x128xf32> -> vector<8x128xf32>
    %16 = arith.addf %14, %15 : vector<8x128xf32>
    %17 = vector.broadcast %6 : vector<1x128xf32> to vector<8x128xf32>
    %18 = arith.addf %16, %17 : vector<8x128xf32>
    %cst_19 = arith.constant 0.000000e+00 : f32
    %19 = vector.broadcast %cst_19 : f32 to vector<8x128xf32>
    %20 = arith.maximumf %18, %19 : vector<8x128xf32>
    %cst_20 = arith.constant dense<0.000000e+00> : vector<8x1xf32>
    %21 = tpu.matmul %20, %7, %cst_20 {dimension_numbers = #tpu.dot_dimension_numbers<[1], [0], [0], [1], [0, 0, 1, 1], [], []>} : vector<8x128xf32>, vector<128x1xf32>, vector<8x1xf32> -> vector<8x1xf32>
    %22 = vector.broadcast %8 : vector<1x1xf32> to vector<8x1xf32>
    %23 = arith.addf %21, %22 : vector<8x1xf32>
    %c0_21 = arith.constant 0 : index
    %c0_22 = arith.constant 0 : index
    %24 = vector.load %arg9[%c0_21, %c0_22] : memref<8x1xf32, #tpu.memory_space<vmem>>, vector<8x1xf32>
    tpu.vector_store %arg9[%c0_21, %c0_22], %23 {strides = array<i32>} : memref<8x1xf32, #tpu.memory_space<vmem>>, vector<8x1xf32>,
    return
  }
  func.func @transform_0(%arg0: i32) -> (i32, i32) {
    %c0_i32 = arith.constant 0 : i32
    %c0_i32_0 = arith.constant 0 : i32
    return %arg0, %c0_i32 : i32, i32
  }
  func.func @transform_1(%arg0: i32) -> (i32, i32) {
    %c0_i32 = arith.constant 0 : i32
    %c0_i32_0 = arith.constant 0 : i32
    return %arg0, %c0_i32 : i32, i32
  }
  func.func @transform_2(%arg0: i32) -> (i32, i32) {
    %c0_i32 = arith.constant 0 : i32
    %c0_i32_0 = arith.constant 0 : i32
    %c0_i32_1 = arith.constant 0 : i32
    return %c0_i32, %c0_i32_0 : i32, i32
  }
  func.func @transform_3(%arg0: i32) -> (i32, i32) {
    %c0_i32 = arith.constant 0 : i32
    %c0_i32_0 = arith.constant 0 : i32
    %c0_i32_1 = arith.constant 0 : i32
    return %c0_i32, %c0_i32_0 : i32, i32
  }
  func.func @transform_4(%arg0: i32) -> (i32, i32) {
    %c0_i32 = arith.constant 0 : i32
    %c0_i32_0 = arith.constant 0 : i32
    %c0_i32_1 = arith.constant 0 : i32
    return %c0_i32, %c0_i32_0 : i32, i32
  }
  func.func @transform_5(%arg0: i32) -> (i32, i32) {
    %c0_i32 = arith.constant 0 : i32
    %c0_i32_0 = arith.constant 0 : i32
    %c0_i32_1 = arith.constant 0 : i32
    return %c0_i32, %c0_i32_0 : i32, i32
  }
  func.func @transform_6(%arg0: i32) -> (i32, i32) {
    %c0_i32 = arith.constant 0 : i32
    %c0_i32_0 = arith.constant 0 : i32
    %c0_i32_1 = arith.constant 0 : i32
    return %c0_i32, %c0_i32_0 : i32, i32
  }
  func.func @transform_7(%arg0: i32) -> (i32, i32) {
    %c0_i32 = arith.constant 0 : i32
    %c0_i32_0 = arith.constant 0 : i32
    %c0_i32_1 = arith.constant 0 : i32
    return %c0_i32, %c0_i32_0 : i32, i32
  }
  func.func @transform_8(%arg0: i32) -> (i32, i32) {
    %c0_i32 = arith.constant 0 : i32
    %c0_i32_0 = arith.constant 0 : i32
    return %arg0, %c0_i32 : i32, i32
  }
}

</mosaic_0001>

<llo_original>
// kernel: critic_forward.1
$region0: #{critic_forward.1}
  #allocation0 [shape = 'u32[]', space=smem, size = 0x4, offset = 0x4, fixed_abs, tag = 'smem constant byte address 0x4 - core index']
  #allocation1 [shape = 'u32[144,128]{1,0:T(1,128)}', space=vmem, size = 0x12000, scoped, tag = 'internal scratch']
  #allocation2 [shape = 'f32[1,1]{1,0:T(1,128)S(1)}', space=vmem, size = 0x200, scoped, tag = 'scoped memory for critic_forward.1']
  %s0 = inlined_call_operand.vmem [shape: f32[8,16], index: 0, kind: input, shape index: {}]
  %s1 = inlined_call_operand.vmem [shape: f32[8,4], index: 1, kind: input, shape index: {}]
  %s2 = inlined_call_operand.vmem [shape: f32[16,256], index: 2, kind: input, shape index: {}]
  %s3 = inlined_call_operand.vmem [shape: f32[1,256], index: 3, kind: input, shape index: {}]
  %s4 = inlined_call_operand.hbm [shape: f32[260,128], index: 4, kind: input, shape index: {}]
  %s5 = inlined_call_operand.vmem [shape: f32[1,128], index: 5, kind: input, shape index: {}]
  %s6 = inlined_call_operand.vmem [shape: f32[128,1], index: 6, kind: input, shape index: {}]
  %s7 = inlined_call_operand.<no memory space> [shape: f32[1,1], index: 7, kind: input, shape index: {}]
  %s8 = inlined_call_operand.vmem [shape: f32[8,1], index: 8, kind: output, shape index: {}]
  %s9 = sld [smem:[#allocation0]]
  $region46: #{critic_forward.1} parent=0
    _
  %s11 = ssub.s32 1, %s9
  %s12 = scalar_select 0, %s11, %s9
  %v13 = vstv %s7
  %14 = vst [vmem:[#allocation2] sm:$0x1] %v13
  $region1: #{critic_forward.1} parent=0
    #allocation3 [shape = 'u8[135168]{0}', space=vmem, size = 0x21000, scoped, tag = 'input window, operand 4, single buffered']
    #allocation4 [shape = 's32[1]{0}', space=sflag, size = 0x4, scoped, tag = 'scoped memory for critic_forward.1']
    %15 = vsyncpa [#allocation4], 0
    // Predicated region
    $region2: #{critic_forward.1} parent=1 // pred_check
      _
    $region3: #{critic_forward.1} parent=1 // pred_check_branch
      %17 = sbr.rel (0) target = $region5
    $region4: #{critic_forward.1} parent=1 // pred_region
      _
    $region5: #{critic_forward.1} parent=1 // pred_fallthru
      _
    // Predicated region
    $region6: #{critic_forward.1} parent=1 // pred_check
      _
    $region7: #{critic_forward.1} parent=1 // pred_check_branch
      %19 = sbr.rel (0) target = $region9
    $region8: #{critic_forward.1} parent=1 // pred_region
      _
    $region9: #{critic_forward.1} parent=1 // pred_fallthru
      _
    // Predicated region
    $region10: #{critic_forward.1} parent=1 // pred_check
      _
    $region11: #{critic_forward.1} parent=1 // pred_check_branch
      %21 = sbr.rel (0) target = $region13
    $region12: #{critic_forward.1} parent=1 // pred_region
      _
    $region13: #{critic_forward.1} parent=1 // pred_fallthru
      _
    // Predicated region
    $region14: #{critic_forward.1} parent=1 // pred_check
      _
    $region15: #{critic_forward.1} parent=1 // pred_check_branch
      %23 = sbr.rel (0) target = $region17
    $region16: #{critic_forward.1} parent=1 // pred_region
      _
    $region17: #{critic_forward.1} parent=1 // pred_fallthru
      _
    // Predicated region
    $region18: #{critic_forward.1} parent=1 // pred_check
      _
    $region19: #{critic_forward.1} parent=1 // pred_check_branch
      %25 = sbr.rel (0) target = $region21
    $region20: #{critic_forward.1} parent=1 // pred_region
      %s27 = ssub.s32 4224, 4224
      %28 = vsyncadd [#allocation4], %s27
      %s29 = sshll.u32 [#allocation3], 4
      %s30 = int_to_ptr.vmem [resolvable:$true] %s29
      %35 = dma.hbm_to_vmem [thread:$0]  %s4, 4224, %s30, [#allocation4], 128, 128, 8
    $region21: #{critic_forward.1} parent=1 // pred_fallthru
      _
    // Predicated region
    $region22: #{critic_forward.1} parent=1 // pred_check
      _
    $region23: #{critic_forward.1} parent=1 // pred_check_branch
      %37 = sbr.rel (0) target = $region25
    $region24: #{critic_forward.1} parent=1 // pred_region
      _
    $region25: #{critic_forward.1} parent=1 // pred_fallthru
      _
    // Predicated region
    $region26: #{critic_forward.1} parent=1 // pred_check
      _
    $region27: #{critic_forward.1} parent=1 // pred_check_branch
      %39 = sbr.rel (0) target = $region29
    $region28: #{critic_forward.1} parent=1 // pred_region
      _
    $region29: #{critic_forward.1} parent=1 // pred_fallthru
      _
    // Predicated region
    $region30: #{critic_forward.1} parent=1 // pred_check
      _
    $region31: #{critic_forward.1} parent=1 // pred_check_branch
      %41 = sbr.rel (0) target = $region33
    $region32: #{critic_forward.1} parent=1 // pred_region
      _
    $region33: #{critic_forward.1} parent=1 // pred_fallthru
      _
    // Predicated region
    $region34: #{critic_forward.1} parent=1 // pred_check
      _
    $region35: #{critic_forward.1} parent=1 // pred_check_branch
      %43 = sbr.rel (0) target = $region37
    $region36: #{critic_forward.1} parent=1 // pred_region
      %44 = dma.done [#allocation4], 4224
    $region37: #{critic_forward.1} parent=1 // pred_fallthru
      _
    %v45 = vld [vmem:[%s0] sm:$0xff]
    %v46 = vld [vmem:[%s1] sm:$0xff]
    %v47 = vld [vmem:[%s2] sm:$0xff]
    %v48 = vld [vmem:[%s2 + $0x8] sm:$0xff]
    %v49 = vld [vmem:[%s2 + $0x10] sm:$0xff]
    %v50 = vld [vmem:[%s2 + $0x18] sm:$0xff]
    %v51 = vld [vmem:[%s3] sm:$0x3]
    %v52 = vld [vmem:[#allocation3] sm:$0xff]
    %v53 = vld [vmem:[#allocation3 + $0x8] sm:$0xff]
    %v54 = vld [vmem:[#allocation3 + $0x10] sm:$0xff]
    %v55 = vld [vmem:[#allocation3 + $0x18] sm:$0xff]
    %v56 = vld [vmem:[#allocation3 + $0x20] sm:$0xff]
    %v57 = vld [vmem:[#allocation3 + $0x28] sm:$0xff]
    %v58 = vld [vmem:[#allocation3 + $0x30] sm:$0xff]
    %v59 = vld [vmem:[#allocation3 + $0x38] sm:$0xff]
    %v60 = vld [vmem:[#allocation3 + $0x40] sm:$0xff]
    %v61 = vld [vmem:[#allocation3 + $0x48] sm:$0xff]
    %v62 = vld [vmem:[#allocation3 + $0x50] sm:$0xff]
    %v63 = vld [vmem:[#allocation3 + $0x58] sm:$0xff]
    %v64 = vld [vmem:[#allocation3 + $0x60] sm:$0xff]
    %v65 = vld [vmem:[#allocation3 + $0x68] sm:$0xff]
    %v66 = vld [vmem:[#allocation3 + $0x70] sm:$0xff]
    %v67 = vld [vmem:[#allocation3 + $0x78] sm:$0xff]
    %v68 = vld [vmem:[#allocation3 + $0x80] sm:$0xff]
    %v69 = vld [vmem:[#allocation3 + $0x88] sm:$0xff]
    %v70 = vld [vmem:[#allocation3 + $0x90] sm:$0xff]
    %v71 = vld [vmem:[#allocation3 + $0x98] sm:$0xff]
    %v72 = vld [vmem:[#allocation3 + $0xa0] sm:$0xff]
    %v73 = vld [vmem:[#allocation3 + $0xa8] sm:$0xff]
    %v74 = vld [vmem:[#allocation3 + $0xb0] sm:$0xff]
    %v75 = vld [vmem:[#allocation3 + $0xb8] sm:$0xff]
    %v76 = vld [vmem:[#allocation3 + $0xc0] sm:$0xff]
    %v77 = vld [vmem:[#allocation3 + $0xc8] sm:$0xff]
    %v78 = vld [vmem:[#allocation3 + $0xd0] sm:$0xff]
    %v79 = vld [vmem:[#allocation3 + $0xd8] sm:$0xff]
    %v80 = vld [vmem:[#allocation3 + $0xe0] sm:$0xff]
    %v81 = vld [vmem:[#allocation3 + $0xe8] sm:$0xff]
    %v82 = vld [vmem:[#allocation3 + $0xf0] sm:$0xff]
    %v83 = vld [vmem:[#allocation3 + $0xf8] sm:$0xff]
    %v84 = vld [vmem:[#allocation3 + $0x100] sm:$0xf]
    %v85 = vld [vmem:[%s5] sm:$0x1]
    %v86 = vld [vmem:[%s6] sm:$0xff]
    %v87 = vld [vmem:[%s6 + $0x8] sm:$0xff]
    %v88 = vld [vmem:[%s6 + $0x10] sm:$0xff]
    %v89 = vld [vmem:[%s6 + $0x18] sm:$0xff]
    %v90 = vld [vmem:[%s6 + $0x20] sm:$0xff]
    %v91 = vld [vmem:[%s6 + $0x28] sm:$0xff]
    %v92 = vld [vmem:[%s6 + $0x30] sm:$0xff]
    %v93 = vld [vmem:[%s6 + $0x38] sm:$0xff]
    %v94 = vld [vmem:[%s6 + $0x40] sm:$0xff]
    %v95 = vld [vmem:[%s6 + $0x48] sm:$0xff]
    %v96 = vld [vmem:[%s6 + $0x50] sm:$0xff]
    %v97 = vld [vmem:[%s6 + $0x58] sm:$0xff]
    %v98 = vld [vmem:[%s6 + $0x60] sm:$0xff]
    %v99 = vld [vmem:[%s6 + $0x68] sm:$0xff]
    %v100 = vld [vmem:[%s6 + $0x70] sm:$0xff]
    %v101 = vld [vmem:[%s6 + $0x78] sm:$0xff]
    %v102 = vld [vmem:[#allocation2] sm:$0x1]
    %v104 = vlaneseq
    %v105 = vshrl.u32 %v104, 7
    %v106 = vsub.s32 0, %v105
    %v107 = vrot.slane %v51, %v106
    %v108 = vlaneseq
    %v109 = vshrl.u32 %v108, 7
    %v110 = vsub.s32 1, %v109
    %v111 = vrot.slane %v51, %v110
    %vm114 = vcmask 130048
    %v116 = vsel %vm114, %v45, 0
    %118 = vmatprep.subr.mxu0 0.0
    %119 = vmatpush1.msra.mxu0 0.0
    %120 = vmatprep.subr.mxu0 0.0
    %121 = vmatpush1.msra.mxu0 0.0
    %122 = vmatprep.subr.mxu0 0.0
    %123 = vmatpush1.msra.mxu0 0.0
    %124 = vmatprep.subr.mxu0 0.0
    %125 = vmatpush1.msra.mxu0 0.0
    %126 = vmatprep.subr.mxu0 0.0
    %127 = vmatpush1.msra.mxu0 0.0
    %128 = vmatprep.subr.mxu0 0.0
    %129 = vmatpush1.msra.mxu0 0.0
    %130 = vmatprep.subr.mxu0 0.0
    %131 = vmatpush1.msra.mxu0 0.0
    %132 = vmatprep.subr.mxu0 0.0
    %133 = vmatpush1.msra.mxu0 0.0
    %134 = vmatprep.subr.mxu0 0.0
    %135 = vmatpush1.msra.mxu0 0.0
    %136 = vmatprep.subr.mxu0 0.0
    %137 = vmatpush1.msra.mxu0 0.0
    %138 = vmatprep.subr.mxu0 0.0
    %139 = vmatpush1.msra.mxu0 0.0
    %140 = vmatprep.subr.mxu0 0.0
    %141 = vmatpush1.msra.mxu0 0.0
    %142 = vmatprep.subr.mxu0 0.0
    %143 = vmatpush1.msra.mxu0 0.0
    %144 = vmatprep.subr.mxu0 0.0
    %145 = vmatpush1.msra.mxu0 0.0
    %146 = vmatprep.subr.mxu0 %v50
    %147 = vmatpush1.msra.mxu0 %v49
    %148 = vmatprep.subr.mxu0 %v48
    %149 = vmatpush1.msra.mxu0 %v47
    %150 = vmatprep.subr.mxu0 0.0
    %151 = vmatpush2.msra.mxu0 0.0
    %152 = vmatprep.subr.mxu0 0.0
    %153 = vmatpush2.msra.mxu0 0.0
    %154 = vmatprep.subr.mxu0 0.0
    %155 = vmatpush2.msra.mxu0 0.0
    %156 = vmatprep.subr.mxu0 0.0
    %157 = vmatpush2.msra.mxu0 0.0
    %158 = vmatprep.subr.mxu0 0.0
    %159 = vmatpush2.msra.mxu0 0.0
    %160 = vmatprep.subr.mxu0 0.0
    %161 = vmatpush2.msra.mxu0 0.0
    %162 = vmatprep.subr.mxu0 0.0
    %163 = vmatpush2.msra.mxu0 0.0
    %164 = vmatprep.subr.mxu0 0.0
    %165 = vmatpush2.msra.mxu0 0.0
    %166 = vmatprep.subr.mxu0 0.0
    %167 = vmatpush2.msra.mxu0 0.0
    %168 = vmatprep.subr.mxu0 0.0
    %169 = vmatpush2.msra.mxu0 0.0
    %170 = vmatprep.subr.mxu0 0.0
    %171 = vmatpush2.msra.mxu0 0.0
    %172 = vmatprep.subr.mxu0 0.0
    %173 = vmatpush2.msra.mxu0 0.0
    %174 = vmatprep.subr.mxu0 0.0
    %175 = vmatpush2.msra.mxu0 0.0
    %176 = vmatprep.subr.mxu0 0.0
    %177 = vmatpush2.msra.mxu0 0.0
    %178 = vmatprep.subr.mxu0 0.0
    %179 = vmatpush2.msra.mxu0 0.0
    %180 = vmatprep.subr.mxu0 0.0
    %181 = vmatpush2.msra.mxu0 0.0
    %182 = vmatprep.mubr.f32.mxu0 0.0
    %183 = vmatmul.mubr.f32.gmra.mxu0 %v116
    %v184 = vpop.f32.mrf.mxu0
    %v185 = vadd.f32 %v107, %v184
    %v186 = vpop.f32.mrf.mxu0
    %v187 = vadd.f32 %v111, %v186
    %188 = vdwg.mxu0
    %v189 = vmax.f32 %v185, 0.0
    %v190 = vmax.f32 %v187, 0.0
    %vm191 = vcmask 31744
    %v193 = vsel %vm191, %v46, 0
    %vm195 = vcmask 1043456
    %v197 = vsel %vm195, %v84, 0
    %199 = vmatprep.subr.mxu0 0.0
    %200 = vmatpush1.msra.mxu0 0.0
    %201 = vmatprep.subr.mxu0 0.0
    %202 = vmatpush1.msra.mxu0 0.0
    %203 = vmatprep.subr.mxu0 0.0
    %204 = vmatpush1.msra.mxu0 0.0
    %205 = vmatprep.subr.mxu0 0.0
    %206 = vmatpush1.msra.mxu0 0.0
    %207 = vmatprep.subr.mxu0 0.0
    %208 = vmatpush1.msra.mxu0 0.0
    %209 = vmatprep.subr.mxu0 0.0
    %210 = vmatpush1.msra.mxu0 0.0
    %211 = vmatprep.subr.mxu0 0.0
    %212 = vmatpush1.msra.mxu0 0.0
    %213 = vmatprep.subr.mxu0 0.0
    %214 = vmatpush1.msra.mxu0 0.0
    %215 = vmatprep.subr.mxu0 0.0
    %216 = vmatpush1.msra.mxu0 0.0
    %217 = vmatprep.subr.mxu0 0.0
    %218 = vmatpush1.msra.mxu0 0.0
    %219 = vmatprep.subr.mxu0 0.0
    %220 = vmatpush1.msra.mxu0 0.0
    %221 = vmatprep.subr.mxu0 0.0
    %222 = vmatpush1.msra.mxu0 0.0
    %223 = vmatprep.subr.mxu0 0.0
    %224 = vmatpush1.msra.mxu0 0.0
    %225 = vmatprep.subr.mxu0 0.0
    %226 = vmatpush1.msra.mxu0 0.0
    %227 = vmatprep.subr.mxu0 0.0
    %228 = vmatpush1.msra.mxu0 0.0
    %229 = vmatprep.subr.mxu0 0.0
    %230 = vmatpush1.msra.mxu0 %v197
    %231 = vmatprep.subr.mxu0 0.0
    %232 = vmatpush2.msra.mxu0 0.0
    %233 = vmatprep.subr.mxu0 0.0
    %234 = vmatpush2.msra.mxu0 0.0
    %235 = vmatprep.subr.mxu0 0.0
    %236 = vmatpush2.msra.mxu0 0.0
    %237 = vmatprep.subr.mxu0 0.0
    %238 = vmatpush2.msra.mxu0 0.0
    %239 = vmatprep.subr.mxu0 0.0
    %240 = vmatpush2.msra.mxu0 0.0
    %241 = vmatprep.subr.mxu0 0.0
    %242 = vmatpush2.msra.mxu0 0.0
    %243 = vmatprep.subr.mxu0 0.0
    %244 = vmatpush2.msra.mxu0 0.0
    %245 = vmatprep.subr.mxu0 0.0
    %246 = vmatpush2.msra.mxu0 0.0
    %247 = vmatprep.subr.mxu0 0.0
    %248 = vmatpush2.msra.mxu0 0.0
    %249 = vmatprep.subr.mxu0 0.0
    %250 = vmatpush2.msra.mxu0 0.0
    %251 = vmatprep.subr.mxu0 0.0
    %252 = vmatpush2.msra.mxu0 0.0
    %253 = vmatprep.subr.mxu0 0.0
    %254 = vmatpush2.msra.mxu0 0.0
    %255 = vmatprep.subr.mxu0 0.0
    %256 = vmatpush2.msra.mxu0 0.0
    %257 = vmatprep.subr.mxu0 0.0
    %258 = vmatpush2.msra.mxu0 0.0
    %259 = vmatprep.subr.mxu0 0.0
    %260 = vmatpush2.msra.mxu0 0.0
    %261 = vmatprep.subr.mxu0 0.0
    %262 = vmatpush2.msra.mxu0 0.0
    %263 = vmatprep.mubr.f32.mxu0 0.0
    %264 = vmatmul.mubr.f32.gmra.mxu0 %v193
    %v265 = vpop.f32.mrf.mxu0
    %v266 = vadd.f32 0.0, %v265
    %v267 = vpop.f32.mrf.mxu0
    %268 = vdwg.mxu0
    %269 = vmatprep.subr.mxu0 0.0
    %270 = vmatpush1.msra.mxu0 %v67
    %271 = vmatprep.subr.mxu0 0.0
    %272 = vmatpush1.msra.mxu0 %v66
    %273 = vmatprep.subr.mxu0 0.0
    %274 = vmatpush1.msra.mxu0 %v65
    %275 = vmatprep.subr.mxu0 0.0
    %276 = vmatpush1.msra.mxu0 %v64
    %277 = vmatprep.subr.mxu0 0.0
    %278 = vmatpush1.msra.mxu0 %v63
    %279 = vmatprep.subr.mxu0 0.0
    %280 = vmatpush1.msra.mxu0 %v62
    %281 = vmatprep.subr.mxu0 0.0
    %282 = vmatpush1.msra.mxu0 %v61
    %283 = vmatprep.subr.mxu0 0.0
    %284 = vmatpush1.msra.mxu0 %v60
    %285 = vmatprep.subr.mxu0 0.0
    %286 = vmatpush1.msra.mxu0 %v59
    %287 = vmatprep.subr.mxu0 0.0
    %288 = vmatpush1.msra.mxu0 %v58
    %289 = vmatprep.subr.mxu0 0.0
    %290 = vmatpush1.msra.mxu0 %v57
    %291 = vmatprep.subr.mxu0 0.0
    %292 = vmatpush1.msra.mxu0 %v56
    %293 = vmatprep.subr.mxu0 0.0
    %294 = vmatpush1.msra.mxu0 %v55
    %295 = vmatprep.subr.mxu0 0.0
    %296 = vmatpush1.msra.mxu0 %v54
    %297 = vmatprep.subr.mxu0 0.0
    %298 = vmatpush1.msra.mxu0 %v53
    %299 = vmatprep.subr.mxu0 0.0
    %300 = vmatpush1.msra.mxu0 %v52
    %301 = vmatprep.subr.mxu0 0.0
    %302 = vmatpush2.msra.mxu0 %v83
    %303 = vmatprep.subr.mxu0 0.0
    %304 = vmatpush2.msra.mxu0 %v82
    %305 = vmatprep.subr.mxu0 0.0
    %306 = vmatpush2.msra.mxu0 %v81
    %307 = vmatprep.subr.mxu0 0.0
    %308 = vmatpush2.msra.mxu0 %v80
    %309 = vmatprep.subr.mxu0 0.0
    %310 = vmatpush2.msra.mxu0 %v79
    %311 = vmatprep.subr.mxu0 0.0
    %312 = vmatpush2.msra.mxu0 %v78
    %313 = vmatprep.subr.mxu0 0.0
    %314 = vmatpush2.msra.mxu0 %v77
    %315 = vmatprep.subr.mxu0 0.0
    %316 = vmatpush2.msra.mxu0 %v76
    %317 = vmatprep.subr.mxu0 0.0
    %318 = vmatpush2.msra.mxu0 %v75
    %319 = vmatprep.subr.mxu0 0.0
    %320 = vmatpush2.msra.mxu0 %v74
    %321 = vmatprep.subr.mxu0 0.0
    %322 = vmatpush2.msra.mxu0 %v73
    %323 = vmatprep.subr.mxu0 0.0
    %324 = vmatpush2.msra.mxu0 %v72
    %325 = vmatprep.subr.mxu0 0.0
    %326 = vmatpush2.msra.mxu0 %v71
    %327 = vmatprep.subr.mxu0 0.0
    %328 = vmatpush2.msra.mxu0 %v70
    %329 = vmatprep.subr.mxu0 0.0
    %330 = vmatpush2.msra.mxu0 %v69
    %331 = vmatprep.subr.mxu0 0.0
    %332 = vmatpush2.msra.mxu0 %v68
    %333 = vmatprep.mubr.f32.mxu0 %v190
    %334 = vmatmul.mubr.f32.gmra.mxu0 %v189
    %v335 = vpop.f32.mrf.mxu0
    %v336 = vadd.f32 %v266, %v335
    %v337 = vpop.f32.mrf.mxu0
    %338 = vdwg.mxu0
    %v340 = vlaneseq
    %v341 = vshrl.u32 %v340, 7
    %v342 = vsub.s32 0, %v341
    %v343 = vrot.slane %v85, %v342
    %v345 = vadd.f32 %v336, %v343
    %v346 = vmax.f32 %v345, 0.0
    %v348 = vlaneseq
    %v349 = vshrl.u32 %v348, 7
    %v350 = vsub.s32 0, %v349
    %v351 = vrot.slane %v102, %v350
    %353 = vmatprep.subr.mxu0 0.0
    %354 = vmatpush1.msra.mxu0 %v101
    %355 = vmatprep.subr.mxu0 0.0
    %356 = vmatpush1.msra.mxu0 %v100
    %357 = vmatprep.subr.mxu0 0.0
    %358 = vmatpush1.msra.mxu0 %v99
    %359 = vmatprep.subr.mxu0 0.0
    %360 = vmatpush1.msra.mxu0 %v98
    %361 = vmatprep.subr.mxu0 0.0
    %362 = vmatpush1.msra.mxu0 %v97
    %363 = vmatprep.subr.mxu0 0.0
    %364 = vmatpush1.msra.mxu0 %v96
    %365 = vmatprep.subr.mxu0 0.0
    %366 = vmatpush1.msra.mxu0 %v95
    %367 = vmatprep.subr.mxu0 0.0
    %368 = vmatpush1.msra.mxu0 %v94
    %369 = vmatprep.subr.mxu0 0.0
    %370 = vmatpush1.msra.mxu0 %v93
    %371 = vmatprep.subr.mxu0 0.0
    %372 = vmatpush1.msra.mxu0 %v92
    %373 = vmatprep.subr.mxu0 0.0
    %374 = vmatpush1.msra.mxu0 %v91
    %375 = vmatprep.subr.mxu0 0.0
    %376 = vmatpush1.msra.mxu0 %v90
    %377 = vmatprep.subr.mxu0 0.0
    %378 = vmatpush1.msra.mxu0 %v89
    %379 = vmatprep.subr.mxu0 0.0
    %380 = vmatpush1.msra.mxu0 %v88
    %381 = vmatprep.subr.mxu0 0.0
    %382 = vmatpush1.msra.mxu0 %v87
    %383 = vmatprep.subr.mxu0 0.0
    %384 = vmatpush1.msra.mxu0 %v86
    %385 = vmatprep.subr.mxu0 0.0
    %386 = vmatpush2.msra.mxu0 0.0
    %387 = vmatprep.subr.mxu0 0.0
    %388 = vmatpush2.msra.mxu0 0.0
    %389 = vmatprep.subr.mxu0 0.0
    %390 = vmatpush2.msra.mxu0 0.0
    %391 = vmatprep.subr.mxu0 0.0
    %392 = vmatpush2.msra.mxu0 0.0
    %393 = vmatprep.subr.mxu0 0.0
    %394 = vmatpush2.msra.mxu0 0.0
    %395 = vmatprep.subr.mxu0 0.0
    %396 = vmatpush2.msra.mxu0 0.0
    %397 = vmatprep.subr.mxu0 0.0
    %398 = vmatpush2.msra.mxu0 0.0
    %399 = vmatprep.subr.mxu0 0.0
    %400 = vmatpush2.msra.mxu0 0.0
    %401 = vmatprep.subr.mxu0 0.0
    %402 = vmatpush2.msra.mxu0 0.0
    %403 = vmatprep.subr.mxu0 0.0
    %404 = vmatpush2.msra.mxu0 0.0
    %405 = vmatprep.subr.mxu0 0.0
    %406 = vmatpush2.msra.mxu0 0.0
    %407 = vmatprep.subr.mxu0 0.0
    %408 = vmatpush2.msra.mxu0 0.0
    %409 = vmatprep.subr.mxu0 0.0
    %410 = vmatpush2.msra.mxu0 0.0
    %411 = vmatprep.subr.mxu0 0.0
    %412 = vmatpush2.msra.mxu0 0.0
    %413 = vmatprep.subr.mxu0 0.0
    %414 = vmatpush2.msra.mxu0 0.0
    %415 = vmatprep.subr.mxu0 0.0
    %416 = vmatpush2.msra.mxu0 0.0
    %417 = vmatprep.mubr.f32.mxu0 0.0
    %418 = vmatmul.mubr.f32.gmra.mxu0 %v346
    %v419 = vpop.f32.mrf.mxu0
    %v420 = vadd.f32 %v351, %v419
    %v421 = vpop.f32.mrf.mxu0
    %422 = vdwg.mxu0
    %vm423 = vcmask 7168
    %424 = vst.msk [vmem:[%s8] sm:$0xff] %vm423, %v420
    // Predicated region
    $region38: #{critic_forward.1} parent=1 // pred_check
      _
    $region39: #{critic_forward.1} parent=1 // pred_check_branch
      %426 = sbr.rel (0) target = $region41
    $region40: #{critic_forward.1} parent=1 // pred_region
      _
    $region41: #{critic_forward.1} parent=1 // pred_fallthru
      _
    // Predicated region
    $region42: #{critic_forward.1} parent=1 // pred_check
      _
    $region43: #{critic_forward.1} parent=1 // pred_check_branch
      %428 = sbr.rel (0) target = $region45
    $region44: #{critic_forward.1} parent=1 // pred_region
      _
    $region45: #{critic_forward.1} parent=1 // pred_fallthru
      _
    %429 = vsyncpa [#allocation4], 1

</llo_original>
